<compile_context>
chip_gen: v7x
topology: tpu7x:2x2x1
jax: 0.10.0
libtpu: 0.0.40
codegen_flags: <defaults>
</compile_context>

<pallas_src>
import functools

import jax
import jax.numpy as jnp
from jax.experimental import pallas as pl
from jax.experimental.pallas import tpu as pltpu

LANE = 128  # TPU lane width: pad the action axis to a multiple of this.


def _policy_kernel(states_ref, w_ref, b_ref, std_ref, eps_ref,
                   actions_ref, logits_ref, *, apply_tanh: bool):
    # [TB, S] @ [S, A_pad] on the MXU with f32 accumulation.
    mean = jnp.dot(states_ref[...], w_ref[...],
                   preferred_element_type=jnp.float32)
    mean = mean + b_ref[...]                         # [1, A_pad] broadcast over rows
    logits = mean + std_ref[...] * eps_ref[...]      # reparameterized sample
    logits_ref[...] = logits
    actions_ref[...] = jnp.tanh(logits) if apply_tanh else logits


@functools.partial(jax.jit, static_argnames=("output_transform_tanh", "batch_tile"))
def stochastic_policy_forward(states, w, b, log_std, eps, *,
                              output_transform_tanh: bool = True,
                              batch_tile: int = 128):
    """Pallas implementation of StochasticBasePolicy.forward.

    Returns (actions, action_logits, dist) with dist = (mean, std).
    """
    B, S = states.shape
    S2, A = w.shape
    assert S == S2 and eps.shape == (B, A)

    # Batch-invariant parameter work stays outside the kernel (hoisted once).
    std = jnp.exp(log_std).astype(jnp.float32)       # [A]

    # Lane-dense padding of the action axis and sublane-friendly batch tiling.
    A_pad = pl.cdiv(A, LANE) * LANE
    TB = min(batch_tile, ((B + 7) // 8) * 8)
    B_pad = pl.cdiv(B, TB) * TB

    states_p = jnp.pad(states, ((0, B_pad - B), (0, 0)))
    w_p = jnp.pad(w, ((0, 0), (0, A_pad - A)))
    b_p = jnp.pad(b, (0, A_pad - A)).reshape(1, A_pad)
    std_p = jnp.pad(std, (0, A_pad - A)).reshape(1, A_pad)
    eps_p = jnp.pad(eps, ((0, B_pad - B), (0, A_pad - A)))

    kernel = functools.partial(_policy_kernel, apply_tanh=output_transform_tanh)

    cost = pl.CostEstimate(
        flops=2 * B_pad * S * A_pad + 3 * B_pad * A_pad,
        transcendentals=B_pad * A_pad if output_transform_tanh else 0,
        bytes_accessed=4 * (B_pad * S + S * A_pad + 2 * A_pad
                            + 3 * B_pad * A_pad),
    )

    actions_p, logits_p = pl.pallas_call(
        kernel,
        grid=(B_pad // TB,),
        in_specs=[
            pl.BlockSpec((TB, S), lambda i: (i, 0)),      # states: tiled over batch
            pl.BlockSpec((S, A_pad), lambda i: (0, 0)),   # W: resident across steps
            pl.BlockSpec((1, A_pad), lambda i: (0, 0)),   # bias: resident
            pl.BlockSpec((1, A_pad), lambda i: (0, 0)),   # std (exp hoisted outside)
            pl.BlockSpec((TB, A_pad), lambda i: (i, 0)),  # eps: tiled over batch
        ],
        out_specs=[
            pl.BlockSpec((TB, A_pad), lambda i: (i, 0)),  # actions
            pl.BlockSpec((TB, A_pad), lambda i: (i, 0)),  # logits
        ],
        out_shape=[
            jax.ShapeDtypeStruct((B_pad, A_pad), jnp.float32),
            jax.ShapeDtypeStruct((B_pad, A_pad), jnp.float32),
        ],
        input_output_aliases={4: 1},  # eps buffer reused for the logits output
        compiler_params=pltpu.CompilerParams(
            dimension_semantics=("parallel",)),  # shard batch tiles across TCs (v7x)
        cost_estimate=cost,
    )(states_p, w_p, b_p, std_p, eps_p)

    actions = actions_p[:B, :A]
    logits = logits_p[:B, :A]
    # Reconstruct the Gaussian mean cheaply outside the kernel (saves one [B, A_pad]
    # store per tile on v5e's single vector-store slot).
    mean = logits - std[None, :] * eps
    dist = (mean, std.reshape(1, A))
    return actions, logits, dist


if __name__ == "__main__":
    # Small shapes consistent with the module: state_size=32, action_size=8.
    # batch=200 exercises the batch grid (2 tiles of 128) and the padding path.
    B, S, A = 200, 32, 8
    key = jax.random.PRNGKey(0)
    k_states, k_w, k_b, k_logstd, k_eps = jax.random.split(key, 5)

    states = jax.random.normal(k_states, (B, S), dtype=jnp.float32)
    # Deterministic "parameters" (synthetic init, not a checkpoint load).
    w = jax.random.normal(k_w, (S, A), dtype=jnp.float32) * 0.1
    b = jax.random.normal(k_b, (A,), dtype=jnp.float32) * 0.01
    log_std = jnp.full((A,), -0.5, dtype=jnp.float32)
    # Reparameterization noise (the "dist.sample()" randomness), drawn in-script.
    eps = jax.random.normal(k_eps, (B, A), dtype=jnp.float32)

    actions, logits, (mean, std) = stochastic_policy_forward(
        states, w, b, log_std, eps, output_transform_tanh=True)
    jax.block_until_ready((actions, logits, mean, std))

    # Pure-JAX reference check.
    mean_ref = states @ w + b[None, :]
    std_ref = jnp.exp(log_std)[None, :]
    logits_ref = mean_ref + std_ref * eps
    actions_ref = jnp.tanh(logits_ref)
    assert jnp.allclose(std, std_ref, atol=1e-6)
    assert jnp.allclose(logits, logits_ref, atol=1e-5)
    assert jnp.allclose(actions, actions_ref, atol=1e-5)
    assert jnp.allclose(mean, mean_ref, atol=1e-5)

    print("KERNEL_OK")
</pallas_src>

<mosaic_0001>
module attributes {stable_mosaic.version = 11 : i64} {
  func.func @_policy_kernel(%arg0: i32, %arg1: memref<128x32xf32, #tpu.memory_space<vmem>>, %arg2: memref<32x128xf32, #tpu.memory_space<vmem>>, %arg3: memref<1x128xf32, #tpu.memory_space<vmem>>, %arg4: memref<1x128xf32, #tpu.memory_space<vmem>>, %arg5: memref<128x128xf32, #tpu.memory_space<vmem>>, %arg6: memref<128x128xf32, #tpu.memory_space<vmem>>, %arg7: memref<128x128xf32, #tpu.memory_space<vmem>>) attributes {dimension_semantics = [#tpu.dimension_semantics<parallel>], iteration_bounds = array<i64: 2>, scalar_prefetch = 0 : i64, scratch_operands = 0 : i64, tpu.core_type = #tpu.core_type<tc>, window_params = [{transform_indices = @transform_0, window_bounds = array<i64: 128, 32>}, {pipeline_mode = #tpu.pipeline_mode<synchronous>, transform_indices = @transform_1, window_bounds = array<i64: 32, 128>}, {pipeline_mode = #tpu.pipeline_mode<synchronous>, transform_indices = @transform_2, window_bounds = array<i64: 1, 128>}, {pipeline_mode = #tpu.pipeline_mode<synchronous>, transform_indices = @transform_3, window_bounds = array<i64: 1, 128>}, {transform_indices = @transform_4, window_bounds = array<i64: 128, 128>}, {transform_indices = @transform_5, window_bounds = array<i64: 128, 128>}, {transform_indices = @transform_6, window_bounds = array<i64: 128, 128>}]} {
    %c0 = arith.constant 0 : index
    %c0_0 = arith.constant 0 : index
    %0 = vector.load %arg1[%c0, %c0_0] : memref<128x32xf32, #tpu.memory_space<vmem>>, vector<128x32xf32>
    %c0_1 = arith.constant 0 : index
    %c0_2 = arith.constant 0 : index
    %1 = vector.load %arg2[%c0_1, %c0_2] : memref<32x128xf32, #tpu.memory_space<vmem>>, vector<32x128xf32>
    %cst = arith.constant dense<0.000000e+00> : vector<128x128xf32>
    %2 = tpu.matmul %0, %1, %cst {dimension_numbers = #tpu.dot_dimension_numbers<[1], [0], [0], [1], [0, 0, 1, 1], [], []>} : vector<128x32xf32>, vector<32x128xf32>, vector<128x128xf32> -> vector<128x128xf32>
    %c0_3 = arith.constant 0 : index
    %c0_4 = arith.constant 0 : index
    %3 = vector.load %arg3[%c0_3, %c0_4] : memref<1x128xf32, #tpu.memory_space<vmem>>, vector<1x128xf32>
    %4 = vector.broadcast %3 : vector<1x128xf32> to vector<128x128xf32>
    %5 = arith.addf %2, %4 : vector<128x128xf32>
    %c0_5 = arith.constant 0 : index
    %c0_6 = arith.constant 0 : index
    %6 = vector.load %arg4[%c0_5, %c0_6] : memref<1x128xf32, #tpu.memory_space<vmem>>, vector<1x128xf32>
    %c0_7 = arith.constant 0 : index
    %c0_8 = arith.constant 0 : index
    %7 = vector.load %arg5[%c0_7, %c0_8] : memref<128x128xf32, #tpu.memory_space<vmem>>, vector<128x128xf32>
    %8 = vector.broadcast %6 : vector<1x128xf32> to vector<128x128xf32>
    %9 = arith.mulf %8, %7 : vector<128x128xf32>
    %10 = arith.addf %5, %9 : vector<128x128xf32>
    %c0_9 = arith.constant 0 : index
    %c0_10 = arith.constant 0 : index
    %11 = vector.load %arg7[%c0_9, %c0_10] : memref<128x128xf32, #tpu.memory_space<vmem>>, vector<128x128xf32>
    tpu.vector_store %arg7[%c0_9, %c0_10], %10 {strides = array<i32>} : memref<128x128xf32, #tpu.memory_space<vmem>>, vector<128x128xf32>,
    %12 = math.tanh %10 : vector<128x128xf32>
    %c0_11 = arith.constant 0 : index
    %c0_12 = arith.constant 0 : index
    %13 = vector.load %arg6[%c0_11, %c0_12] : memref<128x128xf32, #tpu.memory_space<vmem>>, vector<128x128xf32>
    tpu.vector_store %arg6[%c0_11, %c0_12], %12 {strides = array<i32>} : memref<128x128xf32, #tpu.memory_space<vmem>>, vector<128x128xf32>,
    return
  }
  func.func @transform_0(%arg0: i32) -> (i32, i32) {
    %c0_i32 = arith.constant 0 : i32
    %c0_i32_0 = arith.constant 0 : i32
    return %arg0, %c0_i32 : i32, i32
  }
  func.func @transform_1(%arg0: i32) -> (i32, i32) {
    %c0_i32 = arith.constant 0 : i32
    %c0_i32_0 = arith.constant 0 : i32
    %c0_i32_1 = arith.constant 0 : i32
    return %c0_i32, %c0_i32_0 : i32, i32
  }
  func.func @transform_2(%arg0: i32) -> (i32, i32) {
    %c0_i32 = arith.constant 0 : i32
    %c0_i32_0 = arith.constant 0 : i32
    %c0_i32_1 = arith.constant 0 : i32
    return %c0_i32, %c0_i32_0 : i32, i32
  }
  func.func @transform_3(%arg0: i32) -> (i32, i32) {
    %c0_i32 = arith.constant 0 : i32
    %c0_i32_0 = arith.constant 0 : i32
    %c0_i32_1 = arith.constant 0 : i32
    return %c0_i32, %c0_i32_0 : i32, i32
  }
  func.func @transform_4(%arg0: i32) -> (i32, i32) {
    %c0_i32 = arith.constant 0 : i32
    %c0_i32_0 = arith.constant 0 : i32
    return %arg0, %c0_i32 : i32, i32
  }
  func.func @transform_5(%arg0: i32) -> (i32, i32) {
    %c0_i32 = arith.constant 0 : i32
    %c0_i32_0 = arith.constant 0 : i32
    return %arg0, %c0_i32 : i32, i32
  }
  func.func @transform_6(%arg0: i32) -> (i32, i32) {
    %c0_i32 = arith.constant 0 : i32
    %c0_i32_0 = arith.constant 0 : i32
    return %arg0, %c0_i32 : i32, i32
  }
}

</mosaic_0001>

<llo_original>
// kernel: stochastic_policy_forward.1
$region0: #{stochastic_policy_forward.1}
  #allocation0 [shape = 'u32[]', space=smem, size = 0x4, offset = 0x4, fixed_abs, tag = 'smem constant byte address 0x4 - core index']
  #allocation1 [shape = 'u32[144,128]{1,0:T(1,128)}', space=vmem, size = 0x12000, scoped, tag = 'internal scratch']
  %s0 = inlined_call_operand.vmem [shape: f32[256,32], index: 0, kind: input, shape index: {}]
  %s1 = inlined_call_operand.vmem [shape: f32[32,128], index: 1, kind: input, shape index: {}]
  %s2 = inlined_call_operand.vmem [shape: f32[1,128], index: 2, kind: input, shape index: {}]
  %s3 = inlined_call_operand.vmem [shape: f32[1,128], index: 3, kind: input, shape index: {}]
  %s4 = inlined_call_operand.vmem [shape: f32[256,128], index: 4, kind: input, shape index: {}, may-alias: {4,6}]
  %s5 = inlined_call_operand.vmem [shape: f32[256,128], index: 5, kind: output, shape index: {0}]
  %s6 = inlined_call_operand.vmem [shape: f32[256,128], index: 6, kind: output, shape index: {1}, may-alias: {4,6}]
  %7 = xla_tuple %s5, %s6
  %s8 = sld [smem:[#allocation0]]
  $region61: #{stochastic_policy_forward.1} parent=0
    _
  %s10 = ssub.s32 1, %s8
  %s11 = scalar_select 0, %s10, %s8
  loop: start=0, step=1, limit=4
  $region2: #{stochastic_policy_forward.1} parent=0 // loop_pre_header
    _
  $region3: #{stochastic_policy_forward.1} parent=0 // loop_header
    %s13 = sphi 0, %s17
    %p14 = scmp.ge.s32.totalorder %s13, 4
    %s23 = sphi 0, %s25
    %s26 = sphi 0, %s23
    %s27 = sphi 0, %s26
    %s43 = sphi 0, %s27
    %s47 = sphi 0, %s47
    %s49 = sphi 0, %s47
    %s50 = sphi 0, %s49
    %s64 = sphi 0, %s50
    %s68 = sphi 0, %s68
    %s70 = sphi 0, %s68
    %s71 = sphi 0, %s70
    %s85 = sphi 0, %s71
    %s89 = sphi 0, %s89
    %s91 = sphi 0, %s89
    %s92 = sphi 0, %s91
    %s106 = sphi 0, %s92
    %s112 = sphi 0, %s114
    %s115 = sphi 0, %s112
    %s116 = sphi 0, %s115
    %s132 = sphi 0, %s116
    %s138 = sphi 0, %s140
    %s141 = sphi 0, %s138
    %s142 = sphi 0, %s141
    %s158 = sphi 0, %s142
    %s164 = sphi 0, %s166
    %s167 = sphi 0, %s164
    %s168 = sphi 0, %s167
    %s184 = sphi 0, %s168
  $region4: #{stochastic_policy_forward.1} parent=0 // loop_header_branch
    %16 = sbr.rel (%p14) target = $region8
  $region5: #{stochastic_policy_forward.1} parent=0 // loop_body
    %s18 = ssub.s32 %s13, 1
    %s19 = ssub.s32 %s13, 2
    %s20 = sadd.s32 %s13, 1
    %s21 = ssub.s32 %s13, %s20
    %p22 = scmp.eq.s32.totalorder %s21, 0
    %s24 = sadd.s32 %s23, 1
    %s25 = scalar_select %p22, %s23, %s24
    %p28 = pneg %p22
    %p29 = scmp.eq.s32.totalorder %s13, 1
    %p30 = por %p28, %p29
    %p31 = scmp.ne.s32.totalorder %s23, %s26
    %p32 = scmp.eq.s32.totalorder %s13, 0
    %p33 = por %p31, %p32
    %p34 = scmp.ne.s32.totalorder %s23, %s26
    %p35 = scmp.eq.s32.totalorder %s18, 1
    %p36 = por %p34, %p35
    %p37 = scmp.ne.s32.totalorder %s26, %s27
    %p38 = scmp.eq.s32.totalorder %s18, 0
    %p39 = por %p37, %p38
    %p40 = scmp.ne.s32.totalorder %s26, %s27
    %p41 = scmp.eq.s32.totalorder %s19, 1
    %p42 = por %p40, %p41
    %p44 = scmp.ne.s32.totalorder %s27, %s43
    %p45 = scmp.eq.s32.totalorder %s19, 0
    %p46 = por %p44, %p45
    %s48 = sadd.s32 %s47, 1
    %p51 = scmp.eq.s32.totalorder %s13, 1
    %p52 = scmp.ne.s32.totalorder %s47, %s49
    %p53 = scmp.eq.s32.totalorder %s13, 0
    %p54 = por %p52, %p53
    %p55 = scmp.ne.s32.totalorder %s47, %s49
    %p56 = scmp.eq.s32.totalorder %s18, 1
    %p57 = por %p55, %p56
    %p58 = scmp.ne.s32.totalorder %s49, %s50
    %p59 = scmp.eq.s32.totalorder %s18, 0
    %p60 = por %p58, %p59
    %p61 = scmp.ne.s32.totalorder %s49, %s50
    %p62 = scmp.eq.s32.totalorder %s19, 1
    %p63 = por %p61, %p62
    %p65 = scmp.ne.s32.totalorder %s50, %s64
    %p66 = scmp.eq.s32.totalorder %s19, 0
    %p67 = por %p65, %p66
    %s69 = sadd.s32 %s68, 1
    %p72 = scmp.eq.s32.totalorder %s13, 1
    %p73 = scmp.ne.s32.totalorder %s68, %s70
    %p74 = scmp.eq.s32.totalorder %s13, 0
    %p75 = por %p73, %p74
    %p76 = scmp.ne.s32.totalorder %s68, %s70
    %p77 = scmp.eq.s32.totalorder %s18, 1
    %p78 = por %p76, %p77
    %p79 = scmp.ne.s32.totalorder %s70, %s71
    %p80 = scmp.eq.s32.totalorder %s18, 0
    %p81 = por %p79, %p80
    %p82 = scmp.ne.s32.totalorder %s70, %s71
    %p83 = scmp.eq.s32.totalorder %s19, 1
    %p84 = por %p82, %p83
    %p86 = scmp.ne.s32.totalorder %s71, %s85
    %p87 = scmp.eq.s32.totalorder %s19, 0
    %p88 = por %p86, %p87
    %s90 = sadd.s32 %s89, 1
    %p93 = scmp.eq.s32.totalorder %s13, 1
    %p94 = scmp.ne.s32.totalorder %s89, %s91
    %p95 = scmp.eq.s32.totalorder %s13, 0
    %p96 = por %p94, %p95
    %p97 = scmp.ne.s32.totalorder %s89, %s91
    %p98 = scmp.eq.s32.totalorder %s18, 1
    %p99 = por %p97, %p98
    %p100 = scmp.ne.s32.totalorder %s91, %s92
    %p101 = scmp.eq.s32.totalorder %s18, 0
    %p102 = por %p100, %p101
    %p103 = scmp.ne.s32.totalorder %s91, %s92
    %p104 = scmp.eq.s32.totalorder %s19, 1
    %p105 = por %p103, %p104
    %p107 = scmp.ne.s32.totalorder %s92, %s106
    %p108 = scmp.eq.s32.totalorder %s19, 0
    %p109 = por %p107, %p108
    %s110 = ssub.s32 %s13, %s20
    %p111 = scmp.eq.s32.totalorder %s110, 0
    %s113 = sadd.s32 %s112, 1
    %s114 = scalar_select %p111, %s112, %s113
    %p117 = pneg %p111
    %p118 = scmp.eq.s32.totalorder %s13, 1
    %p119 = por %p117, %p118
    %p120 = scmp.ne.s32.totalorder %s112, %s115
    %p121 = scmp.eq.s32.totalorder %s13, 0
    %p122 = por %p120, %p121
    %p123 = scmp.ne.s32.totalorder %s112, %s115
    %p124 = scmp.eq.s32.totalorder %s18, 1
    %p125 = por %p123, %p124
    %p126 = scmp.ne.s32.totalorder %s115, %s116
    %p127 = scmp.eq.s32.totalorder %s18, 0
    %p128 = por %p126, %p127
    %p129 = scmp.ne.s32.totalorder %s115, %s116
    %p130 = scmp.eq.s32.totalorder %s19, 1
    %p131 = por %p129, %p130
    %p133 = scmp.ne.s32.totalorder %s116, %s132
    %p134 = scmp.eq.s32.totalorder %s19, 0
    %p135 = por %p133, %p134
    %s136 = ssub.s32 %s13, %s20
    %p137 = scmp.eq.s32.totalorder %s136, 0
    %s139 = sadd.s32 %s138, 1
    %s140 = scalar_select %p137, %s138, %s139
    %p143 = pneg %p137
    %p144 = scmp.eq.s32.totalorder %s13, 1
    %p145 = por %p143, %p144
    %p146 = scmp.ne.s32.totalorder %s138, %s141
    %p147 = scmp.eq.s32.totalorder %s13, 0
    %p148 = por %p146, %p147
    %p149 = scmp.ne.s32.totalorder %s138, %s141
    %p150 = scmp.eq.s32.totalorder %s18, 1
    %p151 = por %p149, %p150
    %p152 = scmp.ne.s32.totalorder %s141, %s142
    %p153 = scmp.eq.s32.totalorder %s18, 0
    %p154 = por %p152, %p153
    %p155 = scmp.ne.s32.totalorder %s141, %s142
    %p156 = scmp.eq.s32.totalorder %s19, 1
    %p157 = por %p155, %p156
    %p159 = scmp.ne.s32.totalorder %s142, %s158
    %p160 = scmp.eq.s32.totalorder %s19, 0
    %p161 = por %p159, %p160
    %s162 = ssub.s32 %s13, %s20
    %p163 = scmp.eq.s32.totalorder %s162, 0
    %s165 = sadd.s32 %s164, 1
    %s166 = scalar_select %p163, %s164, %s165
    %p169 = pneg %p163
    %p170 = scmp.eq.s32.totalorder %s13, 1
    %p171 = por %p169, %p170
    %p172 = scmp.ne.s32.totalorder %s164, %s167
    %p173 = scmp.eq.s32.totalorder %s13, 0
    %p174 = por %p172, %p173
    %p175 = scmp.ne.s32.totalorder %s164, %s167
    %p176 = scmp.eq.s32.totalorder %s18, 1
    %p177 = por %p175, %p176
    %p178 = scmp.ne.s32.totalorder %s167, %s168
    %p179 = scmp.eq.s32.totalorder %s18, 0
    %p180 = por %p178, %p179
    %p181 = scmp.ne.s32.totalorder %s167, %s168
    %p182 = scmp.eq.s32.totalorder %s19, 1
    %p183 = por %p181, %p182
    %p185 = scmp.ne.s32.totalorder %s168, %s184
    %p186 = scmp.eq.s32.totalorder %s19, 0
    %p187 = por %p185, %p186
    %p188 = scmp.le.s32.totalorder 1, %s13
    %p189 = scmp.lt.s32.totalorder %s13, 3
    %p190 = pnand %p188, %p189
    %p191 = pneg %p190
    // Predicated region
    $region9: #{stochastic_policy_forward.1} parent=5 // pred_check
      _
    $region10: #{stochastic_policy_forward.1} parent=5 // pred_check_branch
      %193 = sbr.rel (%p190) target = $region12
    $region11: #{stochastic_policy_forward.1} parent=5 // pred_region
      %s194 = ssub.s32 %s13, 1
      // Predicated region
      $region13: #{stochastic_policy_forward.1} parent=11 // pred_check
        %p195 = pneg %p60
      $region14: #{stochastic_policy_forward.1} parent=11 // pred_check_branch
        %197 = sbr.rel (%p195) target = $region16
      $region15: #{stochastic_policy_forward.1} parent=11 // pred_region
        _
      $region16: #{stochastic_policy_forward.1} parent=11 // pred_fallthru
        _
      // Predicated region
      $region17: #{stochastic_policy_forward.1} parent=11 // pred_check
        %p198 = pneg %p81
      $region18: #{stochastic_policy_forward.1} parent=11 // pred_check_branch
        %200 = sbr.rel (%p198) target = $region20
      $region19: #{stochastic_policy_forward.1} parent=11 // pred_region
        _
      $region20: #{stochastic_policy_forward.1} parent=11 // pred_fallthru
        _
      // Predicated region
      $region21: #{stochastic_policy_forward.1} parent=11 // pred_check
        %p201 = pneg %p102
      $region22: #{stochastic_policy_forward.1} parent=11 // pred_check_branch
        %203 = sbr.rel (%p201) target = $region24
      $region23: #{stochastic_policy_forward.1} parent=11 // pred_region
        _
      $region24: #{stochastic_policy_forward.1} parent=11 // pred_fallthru
        _
    $region12: #{stochastic_policy_forward.1} parent=5 // pred_fallthru
      _
    %p204 = scmp.lt.s32.totalorder %s13, 2
    // Predicated region
    $region25: #{stochastic_policy_forward.1} parent=5 // pred_check
      %p205 = pneg %p204
    $region26: #{stochastic_policy_forward.1} parent=5 // pred_check_branch
      %207 = sbr.rel (%p205) target = $region28
    $region27: #{stochastic_policy_forward.1} parent=5 // pred_region
      // Predicated region
      $region29: #{stochastic_policy_forward.1} parent=27 // pred_check
        %p208 = pneg %p33
      $region30: #{stochastic_policy_forward.1} parent=27 // pred_check_branch
        %210 = sbr.rel (%p208) target = $region32
      $region31: #{stochastic_policy_forward.1} parent=27 // pred_region
        %s211 = smul.u32 16, %s13
        %p212 = scmp.lt.s32.totalorder %s211, 31
        %s213 = scalar_select %p212, %s211, 31
        %s214 = smul.addr %s213, 8
        %s215 = scalar_lea.vmem %s0, %s214
        %s216 = smul.u32 16, %s13
      $region32: #{stochastic_policy_forward.1} parent=27 // pred_fallthru
        _
      // Predicated region
      $region33: #{stochastic_policy_forward.1} parent=27 // pred_check
        %p217 = pneg %p122
      $region34: #{stochastic_policy_forward.1} parent=27 // pred_check_branch
        %219 = sbr.rel (%p217) target = $region36
      $region35: #{stochastic_policy_forward.1} parent=27 // pred_region
        %s220 = smul.u32 16, %s13
        %p221 = scmp.lt.s32.totalorder %s220, 31
        %s222 = scalar_select %p221, %s220, 31
        %s223 = smul.addr %s222, 8
        %s224 = scalar_lea.vmem %s4, %s223
        %s225 = smul.u32 16, %s13
      $region36: #{stochastic_policy_forward.1} parent=27 // pred_fallthru
        _
    $region28: #{stochastic_policy_forward.1} parent=5 // pred_fallthru
      _
    %p226 = scmp.le.s32.totalorder 1, %s13
    %p227 = scmp.lt.s32.totalorder %s13, 3
    %p228 = pnand %p226, %p227
    %p229 = pneg %p228
    // Predicated region
    $region37: #{stochastic_policy_forward.1} parent=5 // pred_check
      _
    $region38: #{stochastic_policy_forward.1} parent=5 // pred_check_branch
      %231 = sbr.rel (%p228) target = $region40
    $region39: #{stochastic_policy_forward.1} parent=5 // pred_region
      %s232 = ssub.s32 %s13, 1
      %s233 = smul.u32 16, %s18
      %p234 = scmp.lt.s32.totalorder %s233, 31
      %s235 = scalar_select %p234, %s233, 31
      %s236 = smul.addr %s235, 8
      %s237 = scalar_lea.vmem %s0, %s236
      %p238 = pneg %p39
      %p239 = pneg %p36
      %p240 = pneg %p60
      %p241 = pneg %p57
      %p242 = pneg %p81
      %p243 = pneg %p78
      %p244 = pneg %p102
      %p245 = pneg %p99
      %s246 = smul.u32 16, %s18
      %p247 = scmp.lt.s32.totalorder %s246, 31
      %s248 = scalar_select %p247, %s246, 31
      %s249 = smul.addr %s248, 8
      %s250 = scalar_lea.vmem %s4, %s249
      %p251 = pneg %p128
      %p252 = pneg %p125
      %p253 = pneg %p154
      %p254 = pneg %p151
      %s255 = smul.u32 16, %s18
      %p256 = scmp.lt.s32.totalorder %s255, 31
      %s257 = scalar_select %p256, %s255, 31
      %s258 = smul.addr %s257, 8
      %s259 = scalar_lea.vmem %s5, %s258
      %p260 = pneg %p180
      %p261 = pneg %p177
      %s262 = smul.u32 16, %s18
      %p263 = scmp.lt.s32.totalorder %s262, 31
      %s264 = scalar_select %p263, %s262, 31
      %s265 = smul.addr %s264, 8
      %s266 = scalar_lea.vmem %s6, %s265
      %s267 = smul.u32 16, %s18
      %p268 = scmp.lt.s32.totalorder %s267, 31
      %s269 = scalar_select %p268, %s267, 31
      %s270 = smul.addr %s269, 8
      %s271 = scalar_lea.vmem %s0, %s270
      %s272 = smul.u32 16, %s18
      %s273 = smul.u32 16, %s18
      %p274 = scmp.lt.s32.totalorder %s273, 31
      %s275 = scalar_select %p274, %s273, 31
      %s276 = smul.addr %s275, 8
      %s277 = scalar_lea.vmem %s4, %s276
      %s278 = smul.u32 16, %s18
      %s279 = smul.u32 16, %s18
      %p280 = scmp.lt.s32.totalorder %s279, 31
      %s281 = scalar_select %p280, %s279, 31
      %s282 = smul.addr %s281, 8
      %s283 = scalar_lea.vmem %s5, %s282
      %s284 = smul.u32 16, %s18
      %s285 = smul.u32 16, %s18
      %p286 = scmp.lt.s32.totalorder %s285, 31
      %s287 = scalar_select %p286, %s285, 31
      %s288 = smul.addr %s287, 8
      %s289 = scalar_lea.vmem %s6, %s288
      %s290 = smul.u32 16, %s18
      %v291 = vld [vmem:[%s271] sm:$0xff]
      %v292 = vld [vmem:[%s271 + $0x8] sm:$0xff]
      %v293 = vld [vmem:[%s271 + $0x10] sm:$0xff]
      %v294 = vld [vmem:[%s271 + $0x18] sm:$0xff]
      %v295 = vld [vmem:[%s271 + $0x20] sm:$0xff]
      %v296 = vld [vmem:[%s271 + $0x28] sm:$0xff]
      %v297 = vld [vmem:[%s271 + $0x30] sm:$0xff]
      %v298 = vld [vmem:[%s271 + $0x38] sm:$0xff]
      %v299 = vld [vmem:[%s271 + $0x40] sm:$0xff]
      %v300 = vld [vmem:[%s271 + $0x48] sm:$0xff]
      %v301 = vld [vmem:[%s271 + $0x50] sm:$0xff]
      %v302 = vld [vmem:[%s271 + $0x58] sm:$0xff]
      %v303 = vld [vmem:[%s271 + $0x60] sm:$0xff]
      %v304 = vld [vmem:[%s271 + $0x68] sm:$0xff]
      %v305 = vld [vmem:[%s271 + $0x70] sm:$0xff]
      %v306 = vld [vmem:[%s271 + $0x78] sm:$0xff]
      %v307 = vld [vmem:[%s1] sm:$0xff]
      %v308 = vld [vmem:[%s1 + $0x8] sm:$0xff]
      %v309 = vld [vmem:[%s1 + $0x10] sm:$0xff]
      %v310 = vld [vmem:[%s1 + $0x18] sm:$0xff]
      %v311 = vld [vmem:[%s2] sm:$0x1]
      %v313 = vlaneseq
      %v314 = vshrl.u32 %v313, 7
      %v315 = vsub.s32 0, %v314
      %v316 = vrot.slane %v311, %v315
      %vm318 = vcmask 261120
      %v320 = vsel %vm318, %v291, 0
      %v323 = vsel %vm318, %v292, 0
      %v326 = vsel %vm318, %v293, 0
      %v329 = vsel %vm318, %v294, 0
      %v332 = vsel %vm318, %v295, 0
      %v335 = vsel %vm318, %v296, 0
      %v338 = vsel %vm318, %v297, 0
      %v341 = vsel %vm318, %v298, 0
      %v344 = vsel %vm318, %v299, 0
      %v347 = vsel %vm318, %v300, 0
      %v350 = vsel %vm318, %v301, 0
      %v353 = vsel %vm318, %v302, 0
      %v356 = vsel %vm318, %v303, 0
      %v359 = vsel %vm318, %v304, 0
      %v362 = vsel %vm318, %v305, 0
      %v365 = vsel %vm318, %v306, 0
      %367 = vmatprep.subr.mxu0 0.0
      %368 = vmatpush1.msra.mxu0 %v307
      %369 = vmatprep.subr.mxu0 0.0
      %370 = vmatpush1.msra.mxu0 %v308
      %371 = vmatprep.subr.mxu0 0.0
      %372 = vmatpush1.msra.mxu0 %v309
      %373 = vmatprep.subr.mxu0 0.0
      %374 = vmatpush1.msra.mxu0 %v310
      %375 = vmatprep.subr.mxu0 0.0
      %376 = vmatpush1.msra.mxu0 0.0
      %377 = vmatprep.subr.mxu0 0.0
      %378 = vmatpush1.msra.mxu0 0.0
      %379 = vmatprep.subr.mxu0 0.0
      %380 = vmatpush1.msra.mxu0 0.0
      %381 = vmatprep.subr.mxu0 0.0
      %382 = vmatpush1.msra.mxu0 0.0
      %383 = vmatprep.subr.mxu0 0.0
      %384 = vmatpush1.msra.mxu0 0.0
      %385 = vmatprep.subr.mxu0 0.0
      %386 = vmatpush1.msra.mxu0 0.0
      %387 = vmatprep.subr.mxu0 0.0
      %388 = vmatpush1.msra.mxu0 0.0
      %389 = vmatprep.subr.mxu0 0.0
      %390 = vmatpush1.msra.mxu0 0.0
      %391 = vmatprep.subr.mxu0 0.0
      %392 = vmatpush1.msra.mxu0 0.0
      %393 = vmatprep.subr.mxu0 0.0
      %394 = vmatpush1.msra.mxu0 0.0
      %395 = vmatprep.subr.mxu0 0.0
      %396 = vmatpush1.msra.mxu0 0.0
      %397 = vmatprep.subr.mxu0 0.0
      %398 = vmatpush1.msra.mxu0 0.0
      %399 = vmatprep.subr.mxu0 0.0
      %400 = vmatpush1.msra.mxu0 0.0
      %401 = vmatprep.subr.mxu0 0.0
      %402 = vmatpush1.msra.mxu0 0.0
      %403 = vmatprep.subr.mxu0 0.0
      %404 = vmatpush1.msra.mxu0 0.0
      %405 = vmatprep.subr.mxu0 0.0
      %406 = vmatpush1.msra.mxu0 0.0
      %407 = vmatprep.subr.mxu0 0.0
      %408 = vmatpush1.msra.mxu0 0.0
      %409 = vmatprep.subr.mxu0 0.0
      %410 = vmatpush1.msra.mxu0 0.0
      %411 = vmatprep.subr.mxu0 0.0
      %412 = vmatpush1.msra.mxu0 0.0
      %413 = vmatprep.subr.mxu0 0.0
      %414 = vmatpush1.msra.mxu0 0.0
      %415 = vmatprep.subr.mxu0 0.0
      %416 = vmatpush1.msra.mxu0 0.0
      %417 = vmatprep.subr.mxu0 0.0
      %418 = vmatpush1.msra.mxu0 0.0
      %419 = vmatprep.subr.mxu0 0.0
      %420 = vmatpush1.msra.mxu0 0.0
      %421 = vmatprep.subr.mxu0 0.0
      %422 = vmatpush1.msra.mxu0 0.0
      %423 = vmatprep.subr.mxu0 0.0
      %424 = vmatpush1.msra.mxu0 0.0
      %425 = vmatprep.subr.mxu0 0.0
      %426 = vmatpush1.msra.mxu0 0.0
      %427 = vmatprep.subr.mxu0 0.0
      %428 = vmatpush1.msra.mxu0 0.0
      %429 = vmatprep.subr.mxu0 0.0
      %430 = vmatpush1.msra.mxu0 0.0
      %431 = vmatprep.mubr.f32.mxu0 0.0
      %432 = vmatmul.mubr.f32.gmra.mrb[0].mxu0 %v320
      %v433 = vpop.f32.mrb[0].mxu0
      %v434 = vadd.f32 %v316, %v433
      %v435 = vpop.f32.mrb[0].mxu0
      %436 = vmatprep.mubr.f32.mxu0 0.0
      %437 = vmatmul.mubr.f32.gmra.mrb[0].mxu0 %v323
      %v438 = vpop.f32.mrb[0].mxu0
      %v439 = vadd.f32 %v316, %v438
      %v440 = vpop.f32.mrb[0].mxu0
      %441 = vmatprep.mubr.f32.mxu0 0.0
      %442 = vmatmul.mubr.f32.gmra.mrb[0].mxu0 %v326
      %v443 = vpop.f32.mrb[0].mxu0
      %v444 = vadd.f32 %v316, %v443
      %v445 = vpop.f32.mrb[0].mxu0
      %446 = vmatprep.mubr.f32.mxu0 0.0
      %447 = vmatmul.mubr.f32.gmra.mrb[0].mxu0 %v329
      %v448 = vpop.f32.mrb[0].mxu0
      %v449 = vadd.f32 %v316, %v448
      %v450 = vpop.f32.mrb[0].mxu0
      %451 = vmatprep.mubr.f32.mxu0 0.0
      %452 = vmatmul.mubr.f32.gmra.mrb[0].mxu0 %v332
      %v453 = vpop.f32.mrb[0].mxu0
      %v454 = vadd.f32 %v316, %v453
      %v455 = vpop.f32.mrb[0].mxu0
      %456 = vmatprep.mubr.f32.mxu0 0.0
      %457 = vmatmul.mubr.f32.gmra.mrb[0].mxu0 %v335
      %v458 = vpop.f32.mrb[0].mxu0
      %v459 = vadd.f32 %v316, %v458
      %v460 = vpop.f32.mrb[0].mxu0
      %461 = vmatprep.mubr.f32.mxu0 0.0
      %462 = vmatmul.mubr.f32.gmra.mrb[0].mxu0 %v338
      %v463 = vpop.f32.mrb[0].mxu0
      %v464 = vadd.f32 %v316, %v463
      %v465 = vpop.f32.mrb[0].mxu0
      %466 = vmatprep.mubr.f32.mxu0 0.0
      %467 = vmatmul.mubr.f32.gmra.mrb[0].mxu0 %v341
      %v468 = vpop.f32.mrb[0].mxu0
      %v469 = vadd.f32 %v316, %v468
      %v470 = vpop.f32.mrb[0].mxu0
      %471 = vmatprep.mubr.f32.mxu0 0.0
      %472 = vmatmul.mubr.f32.gmra.mrb[0].mxu0 %v344
      %v473 = vpop.f32.mrb[0].mxu0
      %v474 = vadd.f32 %v316, %v473
      %v475 = vpop.f32.mrb[0].mxu0
      %476 = vmatprep.mubr.f32.mxu0 0.0
      %477 = vmatmul.mubr.f32.gmra.mrb[0].mxu0 %v347
      %v478 = vpop.f32.mrb[0].mxu0
      %v479 = vadd.f32 %v316, %v478
      %v480 = vpop.f32.mrb[0].mxu0
      %481 = vmatprep.mubr.f32.mxu0 0.0
      %482 = vmatmul.mubr.f32.gmra.mrb[0].mxu0 %v350
      %v483 = vpop.f32.mrb[0].mxu0
      %v484 = vadd.f32 %v316, %v483
      %v485 = vpop.f32.mrb[0].mxu0
      %486 = vmatprep.mubr.f32.mxu0 0.0
      %487 = vmatmul.mubr.f32.gmra.mrb[0].mxu0 %v353
      %v488 = vpop.f32.mrb[0].mxu0
      %v489 = vadd.f32 %v316, %v488
      %v490 = vpop.f32.mrb[0].mxu0
      %491 = vmatprep.mubr.f32.mxu0 0.0
      %492 = vmatmul.mubr.f32.gmra.mrb[0].mxu0 %v356
      %v493 = vpop.f32.mrb[0].mxu0
      %v494 = vadd.f32 %v316, %v493
      %v495 = vpop.f32.mrb[0].mxu0
      %496 = vmatprep.mubr.f32.mxu0 0.0
      %497 = vmatmul.mubr.f32.gmra.mrb[0].mxu0 %v359
      %v498 = vpop.f32.mrb[0].mxu0
      %v499 = vadd.f32 %v316, %v498
      %v500 = vpop.f32.mrb[0].mxu0
      %501 = vmatprep.mubr.f32.mxu0 0.0
      %502 = vmatmul.mubr.f32.gmra.mrb[0].mxu0 %v362
      %v503 = vpop.f32.mrb[0].mxu0
      %v504 = vadd.f32 %v316, %v503
      %v505 = vpop.f32.mrb[0].mxu0
      %506 = vmatprep.mubr.f32.mxu0 0.0
      %507 = vmatmul.mubr.f32.gmra.mrb[0].mxu0 %v365
      %v508 = vpop.f32.mrb[0].mxu0
      %v509 = vadd.f32 %v316, %v508
      %v510 = vpop.f32.mrb[0].mxu0
      %511 = vdwg.mxu0
      %v512 = vld [vmem:[%s3] sm:$0x1]
      %v513 = vld [vmem:[%s277] sm:$0xff]
      %v514 = vld [vmem:[%s277 + $0x8] sm:$0xff]
      %v515 = vld [vmem:[%s277 + $0x10] sm:$0xff]
      %v516 = vld [vmem:[%s277 + $0x18] sm:$0xff]
      %v517 = vld [vmem:[%s277 + $0x20] sm:$0xff]
      %v518 = vld [vmem:[%s277 + $0x28] sm:$0xff]
      %v519 = vld [vmem:[%s277 + $0x30] sm:$0xff]
      %v520 = vld [vmem:[%s277 + $0x38] sm:$0xff]
      %v521 = vld [vmem:[%s277 + $0x40] sm:$0xff]
      %v522 = vld [vmem:[%s277 + $0x48] sm:$0xff]
      %v523 = vld [vmem:[%s277 + $0x50] sm:$0xff]
      %v524 = vld [vmem:[%s277 + $0x58] sm:$0xff]
      %v525 = vld [vmem:[%s277 + $0x60] sm:$0xff]
      %v526 = vld [vmem:[%s277 + $0x68] sm:$0xff]
      %v527 = vld [vmem:[%s277 + $0x70] sm:$0xff]
      %v528 = vld [vmem:[%s277 + $0x78] sm:$0xff]
      %v530 = vlaneseq
      %v531 = vshrl.u32 %v530, 7
      %v532 = vsub.s32 0, %v531
      %v533 = vrot.slane %v512, %v532
      %v535 = vmul.f32 %v533, %v513
      %v536 = vmul.f32 %v533, %v514
      %v537 = vmul.f32 %v533, %v515
      %v538 = vmul.f32 %v533, %v516
      %v539 = vmul.f32 %v533, %v517
      %v540 = vmul.f32 %v533, %v518
      %v541 = vmul.f32 %v533, %v519
      %v542 = vmul.f32 %v533, %v520
      %v543 = vmul.f32 %v533, %v521
      %v544 = vmul.f32 %v533, %v522
      %v545 = vmul.f32 %v533, %v523
      %v546 = vmul.f32 %v533, %v524
      %v547 = vmul.f32 %v533, %v525
      %v548 = vmul.f32 %v533, %v526
      %v549 = vmul.f32 %v533, %v527
      %v550 = vmul.f32 %v533, %v528
      %v551 = vadd.f32 %v434, %v535
      %v552 = vadd.f32 %v439, %v536
      %v553 = vadd.f32 %v444, %v537
      %v554 = vadd.f32 %v449, %v538
      %v555 = vadd.f32 %v454, %v539
      %v556 = vadd.f32 %v459, %v540
      %v557 = vadd.f32 %v464, %v541
      %v558 = vadd.f32 %v469, %v542
      %v559 = vadd.f32 %v474, %v543
      %v560 = vadd.f32 %v479, %v544
      %v561 = vadd.f32 %v484, %v545
      %v562 = vadd.f32 %v489, %v546
      %v563 = vadd.f32 %v494, %v547
      %v564 = vadd.f32 %v499, %v548
      %v565 = vadd.f32 %v504, %v549
      %v566 = vadd.f32 %v509, %v550
      %567 = vst [vmem:[%s289] sm:$0xff] %v551
      %568 = vst [vmem:[%s289 + $0x8] sm:$0xff] %v552
      %569 = vst [vmem:[%s289 + $0x10] sm:$0xff] %v553
      %570 = vst [vmem:[%s289 + $0x18] sm:$0xff] %v554
      %571 = vst [vmem:[%s289 + $0x20] sm:$0xff] %v555
      %572 = vst [vmem:[%s289 + $0x28] sm:$0xff] %v556
      %573 = vst [vmem:[%s289 + $0x30] sm:$0xff] %v557
      %574 = vst [vmem:[%s289 + $0x38] sm:$0xff] %v558
      %575 = vst [vmem:[%s289 + $0x40] sm:$0xff] %v559
      %576 = vst [vmem:[%s289 + $0x48] sm:$0xff] %v560
      %577 = vst [vmem:[%s289 + $0x50] sm:$0xff] %v561
      %578 = vst [vmem:[%s289 + $0x58] sm:$0xff] %v562
      %579 = vst [vmem:[%s289 + $0x60] sm:$0xff] %v563
      %580 = vst [vmem:[%s289 + $0x68] sm:$0xff] %v564
      %581 = vst [vmem:[%s289 + $0x70] sm:$0xff] %v565
      %582 = vst [vmem:[%s289 + $0x78] sm:$0xff] %v566
      %v583 = vtanh.pop %v551
      %v584 = vtanh.pop %v552
      %v585 = vtanh.pop %v553
      %v586 = vtanh.pop %v554
      %v587 = vtanh.pop %v555
      %v588 = vtanh.pop %v556
      %v589 = vtanh.pop %v557
      %v590 = vtanh.pop %v558
      %v591 = vtanh.pop %v559
      %v592 = vtanh.pop %v560
      %v593 = vtanh.pop %v561
      %v594 = vtanh.pop %v562
      %v595 = vtanh.pop %v563
      %v596 = vtanh.pop %v564
      %v597 = vtanh.pop %v565
      %v598 = vtanh.pop %v566
      %599 = vst [vmem:[%s283] sm:$0xff] %v583
      %600 = vst [vmem:[%s283 + $0x8] sm:$0xff] %v584
      %601 = vst [vmem:[%s283 + $0x10] sm:$0xff] %v585
      %602 = vst [vmem:[%s283 + $0x18] sm:$0xff] %v586
      %603 = vst [vmem:[%s283 + $0x20] sm:$0xff] %v587
      %604 = vst [vmem:[%s283 + $0x28] sm:$0xff] %v588
      %605 = vst [vmem:[%s283 + $0x30] sm:$0xff] %v589
      %606 = vst [vmem:[%s283 + $0x38] sm:$0xff] %v590
      %607 = vst [vmem:[%s283 + $0x40] sm:$0xff] %v591
      %608 = vst [vmem:[%s283 + $0x48] sm:$0xff] %v592
      %609 = vst [vmem:[%s283 + $0x50] sm:$0xff] %v593
      %610 = vst [vmem:[%s283 + $0x58] sm:$0xff] %v594
      %611 = vst [vmem:[%s283 + $0x60] sm:$0xff] %v595
      %612 = vst [vmem:[%s283 + $0x68] sm:$0xff] %v596
      %613 = vst [vmem:[%s283 + $0x70] sm:$0xff] %v597
      %614 = vst [vmem:[%s283 + $0x78] sm:$0xff] %v598
      %s615 = smul.u32 16, %s18
      %p616 = scmp.lt.s32.totalorder %s615, 31
      %s617 = scalar_select %p616, %s615, 31
      %s618 = smul.addr %s617, 8
      %s619 = scalar_lea.vmem %s5, %s618
      %s620 = smul.u32 16, %s18
      %p621 = scmp.lt.s32.totalorder %s620, 31
      %s622 = scalar_select %p621, %s620, 31
      %s623 = smul.addr %s622, 8
      %s624 = scalar_lea.vmem %s6, %s623
      // Predicated region
      $region41: #{stochastic_policy_forward.1} parent=39 // pred_check
        %p625 = pneg %p151
      $region42: #{stochastic_policy_forward.1} parent=39 // pred_check_branch
        %627 = sbr.rel (%p625) target = $region44
      $region43: #{stochastic_policy_forward.1} parent=39 // pred_region
        %s628 = smul.u32 16, %s18
      $region44: #{stochastic_policy_forward.1} parent=39 // pred_fallthru
        _
      // Predicated region
      $region45: #{stochastic_policy_forward.1} parent=39 // pred_check
        %p629 = pneg %p177
      $region46: #{stochastic_policy_forward.1} parent=39 // pred_check_branch
        %631 = sbr.rel (%p629) target = $region48
      $region47: #{stochastic_policy_forward.1} parent=39 // pred_region
        %s632 = smul.u32 16, %s18
      $region48: #{stochastic_policy_forward.1} parent=39 // pred_fallthru
        _
    $region40: #{stochastic_policy_forward.1} parent=5 // pred_fallthru
      _
    %p633 = scmp.le.s32.totalorder 2, %s13
    // Predicated region
    $region49: #{stochastic_policy_forward.1} parent=5 // pred_check
      %p634 = pneg %p633
    $region50: #{stochastic_policy_forward.1} parent=5 // pred_check_branch
      %636 = sbr.rel (%p634) target = $region52
    $region51: #{stochastic_policy_forward.1} parent=5 // pred_region
      %s637 = ssub.s32 %s13, 2
      // Predicated region
      $region53: #{stochastic_policy_forward.1} parent=51 // pred_check
        %p638 = pneg %p157
      $region54: #{stochastic_policy_forward.1} parent=51 // pred_check_branch
        %640 = sbr.rel (%p638) target = $region56
      $region55: #{stochastic_policy_forward.1} parent=51 // pred_region
        %s641 = smul.u32 16, %s19
        %p642 = scmp.lt.s32.totalorder %s641, 31
        %s643 = scalar_select %p642, %s641, 31
        %s644 = smul.addr %s643, 8
        %s645 = scalar_lea.vmem %s5, %s644
      $region56: #{stochastic_policy_forward.1} parent=51 // pred_fallthru
        _
      // Predicated region
      $region57: #{stochastic_policy_forward.1} parent=51 // pred_check
        %p646 = pneg %p183
      $region58: #{stochastic_policy_forward.1} parent=51 // pred_check_branch
        %648 = sbr.rel (%p646) target = $region60
      $region59: #{stochastic_policy_forward.1} parent=51 // pred_region
        %s649 = smul.u32 16, %s19
        %p650 = scmp.lt.s32.totalorder %s649, 31
        %s651 = scalar_select %p650, %s649, 31
        %s652 = smul.addr %s651, 8
        %s653 = scalar_lea.vmem %s6, %s652
      $region60: #{stochastic_policy_forward.1} parent=51 // pred_fallthru
        _
    $region52: #{stochastic_policy_forward.1} parent=5 // pred_fallthru
      _
  $region6: #{stochastic_policy_forward.1} parent=0 // loop_footer
    %s17 = sadd.s32 1, %s13
  $region7: #{stochastic_policy_forward.1} parent=0 // loop_footer_branch
    %12 = sbr.rel target = $region3
  $region8: #{stochastic_policy_forward.1} parent=0 // loop_exit
    _

</llo_original>
